<compile_context>
chip_gen: v7x
topology: tpu7x:2x2x1
jax: 0.10.0
libtpu: 0.0.40
codegen_flags: <defaults>
</compile_context>

<pallas_src>
import jax
import jax.numpy as jnp
from jax.experimental import pallas as pl
from jax.experimental.pallas import tpu as pltpu

EPS = 1e-6            # F.pairwise_distance default eps (added to the difference)
DIST_LANES = 128      # lane-dense distance output slab width
_VMEM_GUARD_BYTES = 12 * 1024 * 1024   # stay well under v5e's 16 MiB scoped default


def _triplet_kernel(x_ref, y_ref, z_ref, w1_ref, b1_ref, w2_ref, b2_ref,
                    emb_ref, dist_ref):
    """Shared embedding MLP over the three stacked batches + pairwise L2 dists.

    x/y/z arrive as f32 [B, D]; they are stacked and cast to bf16 in-kernel so
    the whole MLP is 2 matmuls.  Weights arrive pre-cast to bf16; biases and
    the epilogue are f32.  Everything lives fully in VMEM (small shapes).
    """
    B = x_ref.shape[0]

    # ---- stack the three batches and cast once for the MXU ----
    xyz = jnp.concatenate([x_ref[...], y_ref[...], z_ref[...]],
                          axis=0).astype(jnp.bfloat16)          # [3B, D] bf16

    # ---- shared embedding MLP (2 matmuls total, f32 accumulate) ----
    h = jnp.dot(xyz, w1_ref[...],
                preferred_element_type=jnp.float32) + b1_ref[...]
    h = jnp.maximum(h, 0.0)                                     # ReLU (VPU, f32)
    e = jnp.dot(h.astype(jnp.bfloat16), w2_ref[...],
                preferred_element_type=jnp.float32) + b2_ref[...]
    emb_ref[...] = e                                            # [3B, E] f32

    # ---- pairwise L2 distances: ||a - b + eps||_2 per row (torch semantics) ----
    ex = e[0:B]
    ey = e[B:2 * B]
    ez = e[2 * B:3 * B]
    diff_a = ex - ey + EPS
    diff_b = ex - ez + EPS
    da = jnp.sqrt(jnp.sum(diff_a * diff_a, axis=-1, keepdims=True))   # [B, 1]
    db = jnp.sqrt(jnp.sum(diff_b * diff_b, axis=-1, keepdims=True))   # [B, 1]

    # One select: dist_a broadcast over lanes [0,64), dist_b over [64,128).
    col = jax.lax.broadcasted_iota(jnp.int32, dist_ref.shape, 1)
    dist_ref[...] = jnp.where(col < DIST_LANES // 2, da, db)


def triplet_net_forward(x, y, z, prepared_params):
    """x, y, z: [B, C, H, W] (NCHW). Returns (dist_a, dist_b, ex, ey, ez).

    `prepared_params` must come from `prepare_params` (bf16 weights cached
    once, not per call).
    """
    w1b, b1f, w2b, b2f = prepared_params
    B = x.shape[0]
    D = x.shape[1] * x.shape[2] * x.shape[3]
    H = w1b.shape[1]
    E = w2b.shape[1]

    assert B % 8 == 0, "B must be a multiple of 8 (sublane alignment)"
    assert w1b.dtype == jnp.bfloat16 and w2b.dtype == jnp.bfloat16

    # Single-shot VMEM footprint guard (see header comment for the K-grid plan
    # once D grows past this).
    resident = (3 * B * D * 4 + D * H * 2 + H * E * 2
                + 3 * B * H * 4 + 3 * B * E * 4 + B * DIST_LANES * 4)
    assert resident < _VMEM_GUARD_BYTES, (
        "activations/weights no longer fit single-shot VMEM; K-tile over D")

    # Free views: NCHW -> [B, D].  Cast/stack happens inside the kernel.
    xf = x.reshape(B, D).astype(jnp.float32)
    yf = y.reshape(B, D).astype(jnp.float32)
    zf = z.reshape(B, D).astype(jnp.float32)

    flops = 2 * (3 * B) * (D * H + H * E)
    bytes_accessed = (3 * B * D * 4                      # f32 activations
                      + D * H * 2 + H * E * 2            # bf16 weights
                      + H * 4 + E * 4                    # f32 biases
                      + 3 * B * E * 4 + B * DIST_LANES * 4)  # f32 outputs
    cost = pl.CostEstimate(flops=flops, transcendentals=2 * B,
                           bytes_accessed=bytes_accessed)

    vmem_spec = pl.BlockSpec(memory_space=pltpu.VMEM)
    emb, dist = pl.pallas_call(
        _triplet_kernel,
        out_shape=(
            jax.ShapeDtypeStruct((3 * B, E), jnp.float32),       # stacked embeddings
            jax.ShapeDtypeStruct((B, DIST_LANES), jnp.float32),  # lane-dense distances
        ),
        in_specs=[vmem_spec] * 7,
        out_specs=(vmem_spec, vmem_spec),
        cost_estimate=cost,
    )(xf, yf, zf, w1b, b1f, w2b, b2f)

    ex, ey, ez = emb[:B], emb[B:2 * B], emb[2 * B:3 * B]
    # Match torch shapes: pairwise_distance returns a 1-D [B] tensor.
    return dist[:, 0], dist[:, DIST_LANES // 2], ex, ey, ez


def init_params(key, d_in, d_hidden, d_embed):
    """Deterministic PyTorch-Linear-style init (uniform ±1/sqrt(fan_in)), f32."""
    k1, k2, k3, k4 = jax.random.split(key, 4)
    lim1 = 1.0 / jnp.sqrt(jnp.float32(d_in))
    lim2 = 1.0 / jnp.sqrt(jnp.float32(d_hidden))
    w1 = jax.random.uniform(k1, (d_in, d_hidden), jnp.float32, -lim1, lim1)
    b1 = jax.random.uniform(k2, (1, d_hidden), jnp.float32, -lim1, lim1)
    w2 = jax.random.uniform(k3, (d_hidden, d_embed), jnp.float32, -lim2, lim2)
    b2 = jax.random.uniform(k4, (1, d_embed), jnp.float32, -lim2, lim2)
    return w1, b1, w2, b2


def prepare_params(params):
    """Cast weights to bf16 ONCE (at init / param update), biases stay f32."""
    w1, b1, w2, b2 = params
    return (w1.astype(jnp.bfloat16), b1.astype(jnp.float32),
            w2.astype(jnp.bfloat16), b2.astype(jnp.float32))


if __name__ == "__main__":
    # Small shapes consistent with the forward: three NCHW image batches.
    B, C, Hs, Ws = 8, 4, 16, 16          # batch=8 keeps sublane alignment
    D = C * Hs * Ws                      # 1024
    HID, EMB = 128, 128

    key = jax.random.PRNGKey(0)
    kx, ky, kz, kp = jax.random.split(key, 4)
    x = jax.random.normal(kx, (B, C, Hs, Ws), jnp.float32)
    y = jax.random.normal(ky, (B, C, Hs, Ws), jnp.float32)
    z = jax.random.normal(kz, (B, C, Hs, Ws), jnp.float32)
    params = init_params(kp, D, HID, EMB)
    prepared = prepare_params(params)          # bf16 weights cached once

    dist_a, dist_b, ex, ey, ez = triplet_net_forward(x, y, z, prepared)
    jax.block_until_ready((dist_a, dist_b, ex, ey, ez))

    # Pure-JAX reference with the same bf16-in / f32-accumulate math.
    w1b, b1f, w2b, b2f = prepared

    def ref_embed(a):
        af = a.reshape(B, D).astype(jnp.bfloat16)
        h = jnp.maximum(
            jnp.dot(af, w1b, preferred_element_type=jnp.float32) + b1f, 0.0)
        return jnp.dot(h.astype(jnp.bfloat16), w2b,
                       preferred_element_type=jnp.float32) + b2f

    rex, rey, rez = ref_embed(x), ref_embed(y), ref_embed(z)
    rda = jnp.sqrt(jnp.sum((rex - rey + EPS) ** 2, axis=-1))
    rdb = jnp.sqrt(jnp.sum((rex - rez + EPS) ** 2, axis=-1))

    assert jnp.allclose(ex, rex, atol=2e-3, rtol=2e-3)
    assert jnp.allclose(ey, rey, atol=2e-3, rtol=2e-3)
    assert jnp.allclose(ez, rez, atol=2e-3, rtol=2e-3)
    assert jnp.allclose(dist_a, rda, atol=2e-3, rtol=2e-3)
    assert jnp.allclose(dist_b, rdb, atol=2e-3, rtol=2e-3)

    print("KERNEL_OK")
</pallas_src>

<mosaic_0001>
module attributes {stable_mosaic.version = 11 : i64} {
  func.func @_triplet_kernel(%arg0: memref<8x1024xf32, #tpu.memory_space<vmem>>, %arg1: memref<8x1024xf32, #tpu.memory_space<vmem>>, %arg2: memref<8x1024xf32, #tpu.memory_space<vmem>>, %arg3: memref<1024x128xbf16, #tpu.memory_space<vmem>>, %arg4: memref<1x128xf32, #tpu.memory_space<vmem>>, %arg5: memref<128x128xbf16, #tpu.memory_space<vmem>>, %arg6: memref<1x128xf32, #tpu.memory_space<vmem>>, %arg7: memref<24x128xf32, #tpu.memory_space<vmem>>, %arg8: memref<8x128xf32, #tpu.memory_space<vmem>>) attributes {dimension_semantics = [], scalar_prefetch = 0 : i64, scratch_operands = 0 : i64, tpu.core_type = #tpu.core_type<tc>} {
    %c0 = arith.constant 0 : index
    %c0_0 = arith.constant 0 : index
    %0 = vector.load %arg0[%c0, %c0_0] : memref<8x1024xf32, #tpu.memory_space<vmem>>, vector<8x1024xf32>
    %c0_1 = arith.constant 0 : index
    %c0_2 = arith.constant 0 : index
    %1 = vector.load %arg1[%c0_1, %c0_2] : memref<8x1024xf32, #tpu.memory_space<vmem>>, vector<8x1024xf32>
    %c0_3 = arith.constant 0 : index
    %c0_4 = arith.constant 0 : index
    %2 = vector.load %arg2[%c0_3, %c0_4] : memref<8x1024xf32, #tpu.memory_space<vmem>>, vector<8x1024xf32>
    %3 = tpu.concatenate %0, %1, %2 in 0 : vector<8x1024xf32>, vector<8x1024xf32>, vector<8x1024xf32> -> vector<24x1024xf32>
    %4 = arith.truncf %3 : vector<24x1024xf32> to vector<24x1024xbf16>
    %c0_5 = arith.constant 0 : index
    %c0_6 = arith.constant 0 : index
    %5 = vector.load %arg3[%c0_5, %c0_6] : memref<1024x128xbf16, #tpu.memory_space<vmem>>, vector<1024x128xbf16>
    %cst = arith.constant dense<0.000000e+00> : vector<24x128xf32>
    %6 = tpu.matmul %4, %5, %cst {dimension_numbers = #tpu.dot_dimension_numbers<[1], [0], [0], [1], [0, 0, 1, 1], [], []>} : vector<24x1024xbf16>, vector<1024x128xbf16>, vector<24x128xf32> -> vector<24x128xf32>
    %c0_7 = arith.constant 0 : index
    %c0_8 = arith.constant 0 : index
    %7 = vector.load %arg4[%c0_7, %c0_8] : memref<1x128xf32, #tpu.memory_space<vmem>>, vector<1x128xf32>
    %8 = vector.broadcast %7 : vector<1x128xf32> to vector<24x128xf32>
    %9 = arith.addf %6, %8 : vector<24x128xf32>
    %cst_9 = arith.constant 0.000000e+00 : f32
    %10 = vector.broadcast %cst_9 : f32 to vector<24x128xf32>
    %11 = arith.maximumf %9, %10 : vector<24x128xf32>
    %12 = arith.truncf %11 : vector<24x128xf32> to vector<24x128xbf16>
    %c0_10 = arith.constant 0 : index
    %c0_11 = arith.constant 0 : index
    %13 = vector.load %arg5[%c0_10, %c0_11] : memref<128x128xbf16, #tpu.memory_space<vmem>>, vector<128x128xbf16>
    %cst_12 = arith.constant dense<0.000000e+00> : vector<24x128xf32>
    %14 = tpu.matmul %12, %13, %cst_12 {dimension_numbers = #tpu.dot_dimension_numbers<[1], [0], [0], [1], [0, 0, 1, 1], [], []>} : vector<24x128xbf16>, vector<128x128xbf16>, vector<24x128xf32> -> vector<24x128xf32>
    %c0_13 = arith.constant 0 : index
    %c0_14 = arith.constant 0 : index
    %15 = vector.load %arg6[%c0_13, %c0_14] : memref<1x128xf32, #tpu.memory_space<vmem>>, vector<1x128xf32>
    %16 = vector.broadcast %15 : vector<1x128xf32> to vector<24x128xf32>
    %17 = arith.addf %14, %16 : vector<24x128xf32>
    %c0_15 = arith.constant 0 : index
    %c0_16 = arith.constant 0 : index
    %18 = vector.load %arg7[%c0_15, %c0_16] : memref<24x128xf32, #tpu.memory_space<vmem>>, vector<24x128xf32>
    tpu.vector_store %arg7[%c0_15, %c0_16], %17 {strides = array<i32>} : memref<24x128xf32, #tpu.memory_space<vmem>>, vector<24x128xf32>,
    %19 = vector.extract_strided_slice %17 {offsets = [0, 0], sizes = [8, 128], strides = [1, 1]} : vector<24x128xf32> to vector<8x128xf32>
    %20 = vector.extract_strided_slice %17 {offsets = [8, 0], sizes = [8, 128], strides = [1, 1]} : vector<24x128xf32> to vector<8x128xf32>
    %21 = vector.extract_strided_slice %17 {offsets = [16, 0], sizes = [8, 128], strides = [1, 1]} : vector<24x128xf32> to vector<8x128xf32>
    %22 = arith.subf %19, %20 : vector<8x128xf32>
    %cst_17 = arith.constant 9.99999997E-7 : f32
    %23 = vector.broadcast %cst_17 : f32 to vector<8x128xf32>
    %24 = arith.addf %22, %23 : vector<8x128xf32>
    %25 = arith.subf %19, %21 : vector<8x128xf32>
    %cst_18 = arith.constant 9.99999997E-7 : f32
    %26 = vector.broadcast %cst_18 : f32 to vector<8x128xf32>
    %27 = arith.addf %25, %26 : vector<8x128xf32>
    %28 = arith.mulf %24, %24 : vector<8x128xf32>
    %cst_19 = arith.constant dense<0.000000e+00> : vector<8xf32>
    %29 = vector.multi_reduction <add>, %28, %cst_19 [1] : vector<8x128xf32> to vector<8xf32>
    %30 = vector.shape_cast %29 : vector<8xf32> to vector<8x1xf32>
    %31 = math.sqrt %30 : vector<8x1xf32>
    %32 = arith.mulf %27, %27 : vector<8x128xf32>
    %cst_20 = arith.constant dense<0.000000e+00> : vector<8xf32>
    %33 = vector.multi_reduction <add>, %32, %cst_20 [1] : vector<8x128xf32> to vector<8xf32>
    %34 = vector.shape_cast %33 : vector<8xf32> to vector<8x1xf32>
    %35 = math.sqrt %34 : vector<8x1xf32>
    %36 = tpu.iota {dimensions = array<i32: 1>} : vector<8x128xi32>
    %c64_i32 = arith.constant 64 : i32
    %37 = vector.broadcast %c64_i32 : i32 to vector<8x128xi32>
    %38 = arith.cmpi slt, %36, %37 : vector<8x128xi32>
    %39 = vector.shape_cast %31 : vector<8x1xf32> to vector<8x1xf32>
    %40 = vector.broadcast %39 : vector<8x1xf32> to vector<8x128xf32>
    %41 = vector.shape_cast %35 : vector<8x1xf32> to vector<8x1xf32>
    %42 = vector.broadcast %41 : vector<8x1xf32> to vector<8x128xf32>
    %43 = arith.select %38, %40, %42 : vector<8x128xi1>, vector<8x128xf32>
    %c0_21 = arith.constant 0 : index
    %c0_22 = arith.constant 0 : index
    %44 = vector.load %arg8[%c0_21, %c0_22] : memref<8x128xf32, #tpu.memory_space<vmem>>, vector<8x128xf32>
    tpu.vector_store %arg8[%c0_21, %c0_22], %43 {strides = array<i32>} : memref<8x128xf32, #tpu.memory_space<vmem>>, vector<8x128xf32>,
    return
  }
}

</mosaic_0001>

<llo_original>
// kernel: tpu_custom_call.1
$region0: #{tpu_custom_call.1}
  #allocation0 [shape = 'u32[]', space=smem, size = 0x4, offset = 0x4, fixed_abs, tag = 'smem constant byte address 0x4 - core index']
  #allocation1 [shape = 'u32[144,128]{1,0:T(1,128)}', space=vmem, size = 0x12000, scoped, tag = 'internal scratch']
  %s0 = inlined_call_operand.hbm [shape: f32[8,1024], index: 0, kind: input, shape index: {}]
  %s1 = inlined_call_operand.hbm [shape: f32[8,1024], index: 1, kind: input, shape index: {}]
  %s2 = inlined_call_operand.hbm [shape: f32[8,1024], index: 2, kind: input, shape index: {}]
  %s3 = inlined_call_operand.hbm [shape: bf16[1024,128], index: 3, kind: input, shape index: {}]
  %s4 = inlined_call_operand.vmem [shape: f32[1,128], index: 4, kind: input, shape index: {}]
  %s5 = inlined_call_operand.hbm [shape: bf16[128,128], index: 5, kind: input, shape index: {}]
  %s6 = inlined_call_operand.vmem [shape: f32[1,128], index: 6, kind: input, shape index: {}]
  %s7 = inlined_call_operand.hbm [shape: f32[24,128], index: 7, kind: output, shape index: {0}]
  %s8 = inlined_call_operand.hbm [shape: f32[8,128], index: 8, kind: output, shape index: {1}]
  %9 = xla_tuple %s7, %s8
  %s10 = sld [smem:[#allocation0]]
  $region66: #{tpu_custom_call.1} parent=0
    _
  %s12 = ssub.s32 1, %s10
  %s13 = scalar_select 0, %s12, %s10
  $region1: #{tpu_custom_call.1} parent=0
    #allocation2 [shape = 'u8[32768]{0}', space=vmem, size = 0x8000, scoped, tag = 'input window, operand 0, single buffered']
    #allocation3 [shape = 's32[1]{0}', space=sflag, size = 0x4, scoped, tag = 'scoped memory for tpu_custom_call.1']
    #allocation4 [shape = 's32[1]{0}', space=sflag, size = 0x4, scoped, tag = 'scoped memory for tpu_custom_call.1']
    #allocation5 [shape = 'u8[32768]{0}', space=vmem, size = 0x8000, scoped, tag = 'input window, operand 1, single buffered']
    #allocation6 [shape = 's32[1]{0}', space=sflag, size = 0x4, scoped, tag = 'scoped memory for tpu_custom_call.1']
    #allocation7 [shape = 'u8[32768]{0}', space=vmem, size = 0x8000, scoped, tag = 'input window, operand 2, single buffered']
    #allocation8 [shape = 'u8[262144]{0}', space=vmem, size = 0x40000, scoped, tag = 'input window, operand 3, single buffered']
    #allocation9 [shape = 's32[1]{0}', space=sflag, size = 0x4, scoped, tag = 'scoped memory for tpu_custom_call.1']
    #allocation10 [shape = 'u8[32768]{0}', space=vmem, size = 0x8000, scoped, tag = 'input window, operand 5, single buffered']
    #allocation11 [shape = 'u8[12288]{0}', space=vmem, size = 0x3000, scoped, tag = 'output window, operand 0, single buffered']
    #allocation12 [shape = 'u8[4096]{0}', space=vmem, size = 0x1000, scoped, tag = 'output window, operand 1, single buffered']
    #allocation13 [shape = 's32[1]{0}', space=sflag, size = 0x4, scoped, tag = 'scoped memory for tpu_custom_call.1']
    %14 = vsyncpa [#allocation3], 0
    %15 = vsyncpa [#allocation6], 0
    %16 = vsyncpa [#allocation9], 0
    %17 = vsyncpa [#allocation4], 0
    %18 = vsyncpa [#allocation13], 0
    // Predicated region
    $region2: #{tpu_custom_call.1} parent=1 // pred_check
      _
    $region3: #{tpu_custom_call.1} parent=1 // pred_check_branch
      %20 = sbr.rel (0) target = $region5
    $region4: #{tpu_custom_call.1} parent=1 // pred_region
      %s22 = ssub.s32 1024, 1024
      %23 = vsyncadd [#allocation3], %s22
      %s25 = sshll.u32 [#allocation2], 4
      %s26 = int_to_ptr.vmem [resolvable:$true] %s25
      %28 = dma.hbm_to_vmem [thread:$0]  %s0, 1024, %s26, [#allocation3]
    $region5: #{tpu_custom_call.1} parent=1 // pred_fallthru
      _
    // Predicated region
    $region6: #{tpu_custom_call.1} parent=1 // pred_check
      _
    $region7: #{tpu_custom_call.1} parent=1 // pred_check_branch
      %30 = sbr.rel (0) target = $region9
    $region8: #{tpu_custom_call.1} parent=1 // pred_region
      %s32 = ssub.s32 1024, 1024
      %33 = vsyncadd [#allocation6], %s32
      %s35 = sshll.u32 [#allocation5], 4
      %s36 = int_to_ptr.vmem [resolvable:$true] %s35
      %38 = dma.hbm_to_vmem [thread:$0]  %s1, 1024, %s36, [#allocation6]
    $region9: #{tpu_custom_call.1} parent=1 // pred_fallthru
      _
    // Predicated region
    $region10: #{tpu_custom_call.1} parent=1 // pred_check
      _
    $region11: #{tpu_custom_call.1} parent=1 // pred_check_branch
      %40 = sbr.rel (0) target = $region13
    $region12: #{tpu_custom_call.1} parent=1 // pred_region
      %s42 = ssub.s32 1024, 1024
      %43 = vsyncadd [#allocation6], %s42
      %s45 = sshll.u32 [#allocation7], 4
      %s46 = int_to_ptr.vmem [resolvable:$true] %s45
      %48 = dma.hbm_to_vmem [thread:$0]  %s2, 1024, %s46, [#allocation6]
    $region13: #{tpu_custom_call.1} parent=1 // pred_fallthru
      _
    // Predicated region
    $region14: #{tpu_custom_call.1} parent=1 // pred_check
      _
    $region15: #{tpu_custom_call.1} parent=1 // pred_check_branch
      %50 = sbr.rel (0) target = $region17
    $region16: #{tpu_custom_call.1} parent=1 // pred_region
      %s52 = ssub.s32 8192, 8192
      %53 = vsyncadd [#allocation9], %s52
      %s54 = sshll.u32 [#allocation8], 4
      %s55 = int_to_ptr.vmem [resolvable:$true] %s54
      %60 = dma.hbm_to_vmem [thread:$0]  %s3, 8192, %s55, [#allocation9], 64, 64, 4
    $region17: #{tpu_custom_call.1} parent=1 // pred_fallthru
      _
    // Predicated region
    $region18: #{tpu_custom_call.1} parent=1 // pred_check
      _
    $region19: #{tpu_custom_call.1} parent=1 // pred_check_branch
      %62 = sbr.rel (0) target = $region21
    $region20: #{tpu_custom_call.1} parent=1 // pred_region
      _
    $region21: #{tpu_custom_call.1} parent=1 // pred_fallthru
      _
    // Predicated region
    $region22: #{tpu_custom_call.1} parent=1 // pred_check
      _
    $region23: #{tpu_custom_call.1} parent=1 // pred_check_branch
      %64 = sbr.rel (0) target = $region25
    $region24: #{tpu_custom_call.1} parent=1 // pred_region
      %s66 = ssub.s32 1024, 1024
      %67 = vsyncadd [#allocation9], %s66
      %s68 = sshll.u32 [#allocation10], 4
      %s69 = int_to_ptr.vmem [resolvable:$true] %s68
      %74 = dma.hbm_to_vmem [thread:$0]  %s5, 1024, %s69, [#allocation9], 64, 64, 4
    $region25: #{tpu_custom_call.1} parent=1 // pred_fallthru
      _
    // Predicated region
    $region26: #{tpu_custom_call.1} parent=1 // pred_check
      _
    $region27: #{tpu_custom_call.1} parent=1 // pred_check_branch
      %76 = sbr.rel (0) target = $region29
    $region28: #{tpu_custom_call.1} parent=1 // pred_region
      _
    $region29: #{tpu_custom_call.1} parent=1 // pred_fallthru
      _
    // Predicated region
    $region30: #{tpu_custom_call.1} parent=1 // pred_check
      _
    $region31: #{tpu_custom_call.1} parent=1 // pred_check_branch
      %78 = sbr.rel (0) target = $region33
    $region32: #{tpu_custom_call.1} parent=1 // pred_region
      %79 = dma.done [#allocation3], 1024
    $region33: #{tpu_custom_call.1} parent=1 // pred_fallthru
      _
    // Predicated region
    $region34: #{tpu_custom_call.1} parent=1 // pred_check
      _
    $region35: #{tpu_custom_call.1} parent=1 // pred_check_branch
      %81 = sbr.rel (0) target = $region37
    $region36: #{tpu_custom_call.1} parent=1 // pred_region
      %82 = dma.done [#allocation6], 1024
    $region37: #{tpu_custom_call.1} parent=1 // pred_fallthru
      _
    // Predicated region
    $region38: #{tpu_custom_call.1} parent=1 // pred_check
      _
    $region39: #{tpu_custom_call.1} parent=1 // pred_check_branch
      %84 = sbr.rel (0) target = $region41
    $region40: #{tpu_custom_call.1} parent=1 // pred_region
      %85 = dma.done [#allocation6], 1024
    $region41: #{tpu_custom_call.1} parent=1 // pred_fallthru
      _
    // Predicated region
    $region42: #{tpu_custom_call.1} parent=1 // pred_check
      _
    $region43: #{tpu_custom_call.1} parent=1 // pred_check_branch
      %87 = sbr.rel (0) target = $region45
    $region44: #{tpu_custom_call.1} parent=1 // pred_region
      %88 = dma.done [#allocation9], 8192
    $region45: #{tpu_custom_call.1} parent=1 // pred_fallthru
      _
    // Predicated region
    $region46: #{tpu_custom_call.1} parent=1 // pred_check
      _
    $region47: #{tpu_custom_call.1} parent=1 // pred_check_branch
      %90 = sbr.rel (0) target = $region49
    $region48: #{tpu_custom_call.1} parent=1 // pred_region
      %91 = dma.done [#allocation9], 1024
    $region49: #{tpu_custom_call.1} parent=1 // pred_fallthru
      _
    %v93 = vld [vmem:[#allocation2] sm:$0xff]
    %v94 = vld [vmem:[#allocation2 + $0x8] sm:$0xff]
    %v95 = vld [vmem:[#allocation2 + $0x10] sm:$0xff]
    %v96 = vld [vmem:[#allocation2 + $0x18] sm:$0xff]
    %v97 = vld [vmem:[#allocation2 + $0x20] sm:$0xff]
    %v98 = vld [vmem:[#allocation2 + $0x28] sm:$0xff]
    %v99 = vld [vmem:[#allocation2 + $0x30] sm:$0xff]
    %v100 = vld [vmem:[#allocation2 + $0x38] sm:$0xff]
    %v101 = vld [vmem:[#allocation5] sm:$0xff]
    %v102 = vld [vmem:[#allocation5 + $0x8] sm:$0xff]
    %v103 = vld [vmem:[#allocation5 + $0x10] sm:$0xff]
    %v104 = vld [vmem:[#allocation5 + $0x18] sm:$0xff]
    %v105 = vld [vmem:[#allocation5 + $0x20] sm:$0xff]
    %v106 = vld [vmem:[#allocation5 + $0x28] sm:$0xff]
    %v107 = vld [vmem:[#allocation5 + $0x30] sm:$0xff]
    %v108 = vld [vmem:[#allocation5 + $0x38] sm:$0xff]
    %v109 = vld [vmem:[#allocation7] sm:$0xff]
    %v110 = vld [vmem:[#allocation7 + $0x8] sm:$0xff]
    %v111 = vld [vmem:[#allocation7 + $0x10] sm:$0xff]
    %v112 = vld [vmem:[#allocation7 + $0x18] sm:$0xff]
    %v113 = vld [vmem:[#allocation7 + $0x20] sm:$0xff]
    %v114 = vld [vmem:[#allocation7 + $0x28] sm:$0xff]
    %v115 = vld [vmem:[#allocation7 + $0x30] sm:$0xff]
    %v116 = vld [vmem:[#allocation7 + $0x38] sm:$0xff]
    %v117 = vpack.c.bf16 %v101, %v93
    %v118 = vpack.c.bf16 %v102, %v94
    %v119 = vpack.c.bf16 %v103, %v95
    %v120 = vpack.c.bf16 %v104, %v96
    %v121 = vpack.c.bf16 %v105, %v97
    %v122 = vpack.c.bf16 %v106, %v98
    %v123 = vpack.c.bf16 %v107, %v99
    %v124 = vpack.c.bf16 %v108, %v100
    %v125 = vpack.c.bf16 %v109, %v109
    %v126 = vpack.c.bf16 %v110, %v110
    %v127 = vpack.c.bf16 %v111, %v111
    %v128 = vpack.c.bf16 %v112, %v112
    %v129 = vpack.c.bf16 %v113, %v113
    %v130 = vpack.c.bf16 %v114, %v114
    %v131 = vpack.c.bf16 %v115, %v115
    %v132 = vpack.c.bf16 %v116, %v116
    %v133 = vld [vmem:[#allocation8] sm:$0xf]
    %v134 = vld [vmem:[#allocation8 + $0x4] sm:$0xf]
    %v135 = vld [vmem:[#allocation8 + $0x8] sm:$0xf]
    %v136 = vld [vmem:[#allocation8 + $0xc] sm:$0xf]
    %v137 = vld [vmem:[#allocation8 + $0x10] sm:$0xf]
    %v138 = vld [vmem:[#allocation8 + $0x14] sm:$0xf]
    %v139 = vld [vmem:[#allocation8 + $0x18] sm:$0xf]
    %v140 = vld [vmem:[#allocation8 + $0x1c] sm:$0xf]
    %v141 = vld [vmem:[#allocation8 + $0x20] sm:$0xf]
    %v142 = vld [vmem:[#allocation8 + $0x24] sm:$0xf]
    %v143 = vld [vmem:[#allocation8 + $0x28] sm:$0xf]
    %v144 = vld [vmem:[#allocation8 + $0x2c] sm:$0xf]
    %v145 = vld [vmem:[#allocation8 + $0x30] sm:$0xf]
    %v146 = vld [vmem:[#allocation8 + $0x34] sm:$0xf]
    %v147 = vld [vmem:[#allocation8 + $0x38] sm:$0xf]
    %v148 = vld [vmem:[#allocation8 + $0x3c] sm:$0xf]
    %v149 = vld [vmem:[#allocation8 + $0x40] sm:$0xf]
    %v150 = vld [vmem:[#allocation8 + $0x44] sm:$0xf]
    %v151 = vld [vmem:[#allocation8 + $0x48] sm:$0xf]
    %v152 = vld [vmem:[#allocation8 + $0x4c] sm:$0xf]
    %v153 = vld [vmem:[#allocation8 + $0x50] sm:$0xf]
    %v154 = vld [vmem:[#allocation8 + $0x54] sm:$0xf]
    %v155 = vld [vmem:[#allocation8 + $0x58] sm:$0xf]
    %v156 = vld [vmem:[#allocation8 + $0x5c] sm:$0xf]
    %v157 = vld [vmem:[#allocation8 + $0x60] sm:$0xf]
    %v158 = vld [vmem:[#allocation8 + $0x64] sm:$0xf]
    %v159 = vld [vmem:[#allocation8 + $0x68] sm:$0xf]
    %v160 = vld [vmem:[#allocation8 + $0x6c] sm:$0xf]
    %v161 = vld [vmem:[#allocation8 + $0x70] sm:$0xf]
    %v162 = vld [vmem:[#allocation8 + $0x74] sm:$0xf]
    %v163 = vld [vmem:[#allocation8 + $0x78] sm:$0xf]
    %v164 = vld [vmem:[#allocation8 + $0x7c] sm:$0xf]
    %v165 = vld [vmem:[#allocation8 + $0x80] sm:$0xf]
    %v166 = vld [vmem:[#allocation8 + $0x84] sm:$0xf]
    %v167 = vld [vmem:[#allocation8 + $0x88] sm:$0xf]
    %v168 = vld [vmem:[#allocation8 + $0x8c] sm:$0xf]
    %v169 = vld [vmem:[#allocation8 + $0x90] sm:$0xf]
    %v170 = vld [vmem:[#allocation8 + $0x94] sm:$0xf]
    %v171 = vld [vmem:[#allocation8 + $0x98] sm:$0xf]
    %v172 = vld [vmem:[#allocation8 + $0x9c] sm:$0xf]
    %v173 = vld [vmem:[#allocation8 + $0xa0] sm:$0xf]
    %v174 = vld [vmem:[#allocation8 + $0xa4] sm:$0xf]
    %v175 = vld [vmem:[#allocation8 + $0xa8] sm:$0xf]
    %v176 = vld [vmem:[#allocation8 + $0xac] sm:$0xf]
    %v177 = vld [vmem:[#allocation8 + $0xb0] sm:$0xf]
    %v178 = vld [vmem:[#allocation8 + $0xb4] sm:$0xf]
    %v179 = vld [vmem:[#allocation8 + $0xb8] sm:$0xf]
    %v180 = vld [vmem:[#allocation8 + $0xbc] sm:$0xf]
    %v181 = vld [vmem:[#allocation8 + $0xc0] sm:$0xf]
    %v182 = vld [vmem:[#allocation8 + $0xc4] sm:$0xf]
    %v183 = vld [vmem:[#allocation8 + $0xc8] sm:$0xf]
    %v184 = vld [vmem:[#allocation8 + $0xcc] sm:$0xf]
    %v185 = vld [vmem:[#allocation8 + $0xd0] sm:$0xf]
    %v186 = vld [vmem:[#allocation8 + $0xd4] sm:$0xf]
    %v187 = vld [vmem:[#allocation8 + $0xd8] sm:$0xf]
    %v188 = vld [vmem:[#allocation8 + $0xdc] sm:$0xf]
    %v189 = vld [vmem:[#allocation8 + $0xe0] sm:$0xf]
    %v190 = vld [vmem:[#allocation8 + $0xe4] sm:$0xf]
    %v191 = vld [vmem:[#allocation8 + $0xe8] sm:$0xf]
    %v192 = vld [vmem:[#allocation8 + $0xec] sm:$0xf]
    %v193 = vld [vmem:[#allocation8 + $0xf0] sm:$0xf]
    %v194 = vld [vmem:[#allocation8 + $0xf4] sm:$0xf]
    %v195 = vld [vmem:[#allocation8 + $0xf8] sm:$0xf]
    %v196 = vld [vmem:[#allocation8 + $0xfc] sm:$0xf]
    %v197 = vld [vmem:[#allocation8 + $0x100] sm:$0xf]
    %v198 = vld [vmem:[#allocation8 + $0x104] sm:$0xf]
    %v199 = vld [vmem:[#allocation8 + $0x108] sm:$0xf]
    %v200 = vld [vmem:[#allocation8 + $0x10c] sm:$0xf]
    %v201 = vld [vmem:[#allocation8 + $0x110] sm:$0xf]
    %v202 = vld [vmem:[#allocation8 + $0x114] sm:$0xf]
    %v203 = vld [vmem:[#allocation8 + $0x118] sm:$0xf]
    %v204 = vld [vmem:[#allocation8 + $0x11c] sm:$0xf]
    %v205 = vld [vmem:[#allocation8 + $0x120] sm:$0xf]
    %v206 = vld [vmem:[#allocation8 + $0x124] sm:$0xf]
    %v207 = vld [vmem:[#allocation8 + $0x128] sm:$0xf]
    %v208 = vld [vmem:[#allocation8 + $0x12c] sm:$0xf]
    %v209 = vld [vmem:[#allocation8 + $0x130] sm:$0xf]
    %v210 = vld [vmem:[#allocation8 + $0x134] sm:$0xf]
    %v211 = vld [vmem:[#allocation8 + $0x138] sm:$0xf]
    %v212 = vld [vmem:[#allocation8 + $0x13c] sm:$0xf]
    %v213 = vld [vmem:[#allocation8 + $0x140] sm:$0xf]
    %v214 = vld [vmem:[#allocation8 + $0x144] sm:$0xf]
    %v215 = vld [vmem:[#allocation8 + $0x148] sm:$0xf]
    %v216 = vld [vmem:[#allocation8 + $0x14c] sm:$0xf]
    %v217 = vld [vmem:[#allocation8 + $0x150] sm:$0xf]
    %v218 = vld [vmem:[#allocation8 + $0x154] sm:$0xf]
    %v219 = vld [vmem:[#allocation8 + $0x158] sm:$0xf]
    %v220 = vld [vmem:[#allocation8 + $0x15c] sm:$0xf]
    %v221 = vld [vmem:[#allocation8 + $0x160] sm:$0xf]
    %v222 = vld [vmem:[#allocation8 + $0x164] sm:$0xf]
    %v223 = vld [vmem:[#allocation8 + $0x168] sm:$0xf]
    %v224 = vld [vmem:[#allocation8 + $0x16c] sm:$0xf]
    %v225 = vld [vmem:[#allocation8 + $0x170] sm:$0xf]
    %v226 = vld [vmem:[#allocation8 + $0x174] sm:$0xf]
    %v227 = vld [vmem:[#allocation8 + $0x178] sm:$0xf]
    %v228 = vld [vmem:[#allocation8 + $0x17c] sm:$0xf]
    %v229 = vld [vmem:[#allocation8 + $0x180] sm:$0xf]
    %v230 = vld [vmem:[#allocation8 + $0x184] sm:$0xf]
    %v231 = vld [vmem:[#allocation8 + $0x188] sm:$0xf]
    %v232 = vld [vmem:[#allocation8 + $0x18c] sm:$0xf]
    %v233 = vld [vmem:[#allocation8 + $0x190] sm:$0xf]
    %v234 = vld [vmem:[#allocation8 + $0x194] sm:$0xf]
    %v235 = vld [vmem:[#allocation8 + $0x198] sm:$0xf]
    %v236 = vld [vmem:[#allocation8 + $0x19c] sm:$0xf]
    %v237 = vld [vmem:[#allocation8 + $0x1a0] sm:$0xf]
    %v238 = vld [vmem:[#allocation8 + $0x1a4] sm:$0xf]
    %v239 = vld [vmem:[#allocation8 + $0x1a8] sm:$0xf]
    %v240 = vld [vmem:[#allocation8 + $0x1ac] sm:$0xf]
    %v241 = vld [vmem:[#allocation8 + $0x1b0] sm:$0xf]
    %v242 = vld [vmem:[#allocation8 + $0x1b4] sm:$0xf]
    %v243 = vld [vmem:[#allocation8 + $0x1b8] sm:$0xf]
    %v244 = vld [vmem:[#allocation8 + $0x1bc] sm:$0xf]
    %v245 = vld [vmem:[#allocation8 + $0x1c0] sm:$0xf]
    %v246 = vld [vmem:[#allocation8 + $0x1c4] sm:$0xf]
    %v247 = vld [vmem:[#allocation8 + $0x1c8] sm:$0xf]
    %v248 = vld [vmem:[#allocation8 + $0x1cc] sm:$0xf]
    %v249 = vld [vmem:[#allocation8 + $0x1d0] sm:$0xf]
    %v250 = vld [vmem:[#allocation8 + $0x1d4] sm:$0xf]
    %v251 = vld [vmem:[#allocation8 + $0x1d8] sm:$0xf]
    %v252 = vld [vmem:[#allocation8 + $0x1dc] sm:$0xf]
    %v253 = vld [vmem:[#allocation8 + $0x1e0] sm:$0xf]
    %v254 = vld [vmem:[#allocation8 + $0x1e4] sm:$0xf]
    %v255 = vld [vmem:[#allocation8 + $0x1e8] sm:$0xf]
    %v256 = vld [vmem:[#allocation8 + $0x1ec] sm:$0xf]
    %v257 = vld [vmem:[#allocation8 + $0x1f0] sm:$0xf]
    %v258 = vld [vmem:[#allocation8 + $0x1f4] sm:$0xf]
    %v259 = vld [vmem:[#allocation8 + $0x1f8] sm:$0xf]
    %v260 = vld [vmem:[#allocation8 + $0x1fc] sm:$0xf]
    %v261 = vld [vmem:[%s4] sm:$0x1]
    %v263 = vlaneseq
    %v264 = vshrl.u32 %v263, 7
    %v265 = vsub.s32 0, %v264
    %v266 = vrot.slane %v261, %v265
    %v396 = vunpack.c.l.b16 %v133
    %v397 = vunpack.c.l.b16 %v134
    %v398 = vunpack.c.l.b16 %v135
    %v399 = vunpack.c.l.b16 %v136
    %v400 = vunpack.c.l.b16 %v137
    %v401 = vunpack.c.l.b16 %v138
    %v402 = vunpack.c.l.b16 %v139
    %v403 = vunpack.c.l.b16 %v140
    %v404 = vunpack.c.l.b16 %v141
    %v405 = vunpack.c.l.b16 %v142
    %v406 = vunpack.c.l.b16 %v143
    %v407 = vunpack.c.l.b16 %v144
    %v408 = vunpack.c.l.b16 %v145
    %v409 = vunpack.c.l.b16 %v146
    %v410 = vunpack.c.l.b16 %v147
    %v411 = vunpack.c.l.b16 %v148
    %v412 = vunpack.c.l.b16 %v149
    %v413 = vunpack.c.l.b16 %v150
    %v414 = vunpack.c.l.b16 %v151
    %v415 = vunpack.c.l.b16 %v152
    %v416 = vunpack.c.l.b16 %v153
    %v417 = vunpack.c.l.b16 %v154
    %v418 = vunpack.c.l.b16 %v155
    %v419 = vunpack.c.l.b16 %v156
    %v420 = vunpack.c.l.b16 %v157
    %v421 = vunpack.c.l.b16 %v158
    %v422 = vunpack.c.l.b16 %v159
    %v423 = vunpack.c.l.b16 %v160
    %v424 = vunpack.c.l.b16 %v161
    %v425 = vunpack.c.l.b16 %v162
    %v426 = vunpack.c.l.b16 %v163
    %v427 = vunpack.c.l.b16 %v164
    %v428 = vunpack.c.l.b16 %v165
    %v429 = vunpack.c.l.b16 %v166
    %v430 = vunpack.c.l.b16 %v167
    %v431 = vunpack.c.l.b16 %v168
    %v432 = vunpack.c.l.b16 %v169
    %v433 = vunpack.c.l.b16 %v170
    %v434 = vunpack.c.l.b16 %v171
    %v435 = vunpack.c.l.b16 %v172
    %v436 = vunpack.c.l.b16 %v173
    %v437 = vunpack.c.l.b16 %v174
    %v438 = vunpack.c.l.b16 %v175
    %v439 = vunpack.c.l.b16 %v176
    %v440 = vunpack.c.l.b16 %v177
    %v441 = vunpack.c.l.b16 %v178
    %v442 = vunpack.c.l.b16 %v179
    %v443 = vunpack.c.l.b16 %v180
    %v444 = vunpack.c.l.b16 %v181
    %v445 = vunpack.c.l.b16 %v182
    %v446 = vunpack.c.l.b16 %v183
    %v447 = vunpack.c.l.b16 %v184
    %v448 = vunpack.c.l.b16 %v185
    %v449 = vunpack.c.l.b16 %v186
    %v450 = vunpack.c.l.b16 %v187
    %v451 = vunpack.c.l.b16 %v188
    %v452 = vunpack.c.l.b16 %v189
    %v453 = vunpack.c.l.b16 %v190
    %v454 = vunpack.c.l.b16 %v191
    %v455 = vunpack.c.l.b16 %v192
    %v456 = vunpack.c.l.b16 %v193
    %v457 = vunpack.c.l.b16 %v194
    %v458 = vunpack.c.l.b16 %v195
    %v459 = vunpack.c.l.b16 %v196
    %v460 = vunpack.c.l.b16 %v197
    %v461 = vunpack.c.l.b16 %v198
    %v462 = vunpack.c.l.b16 %v199
    %v463 = vunpack.c.l.b16 %v200
    %v464 = vunpack.c.l.b16 %v201
    %v465 = vunpack.c.l.b16 %v202
    %v466 = vunpack.c.l.b16 %v203
    %v467 = vunpack.c.l.b16 %v204
    %v468 = vunpack.c.l.b16 %v205
    %v469 = vunpack.c.l.b16 %v206
    %v470 = vunpack.c.l.b16 %v207
    %v471 = vunpack.c.l.b16 %v208
    %v472 = vunpack.c.l.b16 %v209
    %v473 = vunpack.c.l.b16 %v210
    %v474 = vunpack.c.l.b16 %v211
    %v475 = vunpack.c.l.b16 %v212
    %v476 = vunpack.c.l.b16 %v213
    %v477 = vunpack.c.l.b16 %v214
    %v478 = vunpack.c.l.b16 %v215
    %v479 = vunpack.c.l.b16 %v216
    %v480 = vunpack.c.l.b16 %v217
    %v481 = vunpack.c.l.b16 %v218
    %v482 = vunpack.c.l.b16 %v219
    %v483 = vunpack.c.l.b16 %v220
    %v484 = vunpack.c.l.b16 %v221
    %v485 = vunpack.c.l.b16 %v222
    %v486 = vunpack.c.l.b16 %v223
    %v487 = vunpack.c.l.b16 %v224
    %v488 = vunpack.c.l.b16 %v225
    %v489 = vunpack.c.l.b16 %v226
    %v490 = vunpack.c.l.b16 %v227
    %v491 = vunpack.c.l.b16 %v228
    %v492 = vunpack.c.l.b16 %v229
    %v493 = vunpack.c.l.b16 %v230
    %v494 = vunpack.c.l.b16 %v231
    %v495 = vunpack.c.l.b16 %v232
    %v496 = vunpack.c.l.b16 %v233
    %v497 = vunpack.c.l.b16 %v234
    %v498 = vunpack.c.l.b16 %v235
    %v499 = vunpack.c.l.b16 %v236
    %v500 = vunpack.c.l.b16 %v237
    %v501 = vunpack.c.l.b16 %v238
    %v502 = vunpack.c.l.b16 %v239
    %v503 = vunpack.c.l.b16 %v240
    %v504 = vunpack.c.l.b16 %v241
    %v505 = vunpack.c.l.b16 %v242
    %v506 = vunpack.c.l.b16 %v243
    %v507 = vunpack.c.l.b16 %v244
    %v508 = vunpack.c.l.b16 %v245
    %v509 = vunpack.c.l.b16 %v246
    %v510 = vunpack.c.l.b16 %v247
    %v511 = vunpack.c.l.b16 %v248
    %v512 = vunpack.c.l.b16 %v249
    %v513 = vunpack.c.l.b16 %v250
    %v514 = vunpack.c.l.b16 %v251
    %v515 = vunpack.c.l.b16 %v252
    %v516 = vunpack.c.l.b16 %v253
    %v517 = vunpack.c.l.b16 %v254
    %v518 = vunpack.c.l.b16 %v255
    %v519 = vunpack.c.l.b16 %v256
    %v520 = vunpack.c.l.b16 %v257
    %v521 = vunpack.c.l.b16 %v258
    %v522 = vunpack.c.l.b16 %v259
    %v523 = vunpack.c.l.b16 %v260
    %v524 = vpack.c.b16 %v397, %v396
    %v525 = vpack.c.b16 %v399, %v398
    %v526 = vpack.c.b16 %v401, %v400
    %v527 = vpack.c.b16 %v403, %v402
    %v528 = vpack.c.b16 %v405, %v404
    %v529 = vpack.c.b16 %v407, %v406
    %v530 = vpack.c.b16 %v409, %v408
    %v531 = vpack.c.b16 %v411, %v410
    %v532 = vpack.c.b16 %v413, %v412
    %v533 = vpack.c.b16 %v415, %v414
    %v534 = vpack.c.b16 %v417, %v416
    %v535 = vpack.c.b16 %v419, %v418
    %v536 = vpack.c.b16 %v421, %v420
    %v537 = vpack.c.b16 %v423, %v422
    %v538 = vpack.c.b16 %v425, %v424
    %v539 = vpack.c.b16 %v427, %v426
    %v540 = vpack.c.b16 %v429, %v428
    %v541 = vpack.c.b16 %v431, %v430
    %v542 = vpack.c.b16 %v433, %v432
    %v543 = vpack.c.b16 %v435, %v434
    %v544 = vpack.c.b16 %v437, %v436
    %v545 = vpack.c.b16 %v439, %v438
    %v546 = vpack.c.b16 %v441, %v440
    %v547 = vpack.c.b16 %v443, %v442
    %v548 = vpack.c.b16 %v445, %v444
    %v549 = vpack.c.b16 %v447, %v446
    %v550 = vpack.c.b16 %v449, %v448
    %v551 = vpack.c.b16 %v451, %v450
    %v552 = vpack.c.b16 %v453, %v452
    %v553 = vpack.c.b16 %v455, %v454
    %v554 = vpack.c.b16 %v457, %v456
    %v555 = vpack.c.b16 %v459, %v458
    %v556 = vpack.c.b16 %v461, %v460
    %v557 = vpack.c.b16 %v463, %v462
    %v558 = vpack.c.b16 %v465, %v464
    %v559 = vpack.c.b16 %v467, %v466
    %v560 = vpack.c.b16 %v469, %v468
    %v561 = vpack.c.b16 %v471, %v470
    %v562 = vpack.c.b16 %v473, %v472
    %v563 = vpack.c.b16 %v475, %v474
    %v564 = vpack.c.b16 %v477, %v476
    %v565 = vpack.c.b16 %v479, %v478
    %v566 = vpack.c.b16 %v481, %v480
    %v567 = vpack.c.b16 %v483, %v482
    %v568 = vpack.c.b16 %v485, %v484
    %v569 = vpack.c.b16 %v487, %v486
    %v570 = vpack.c.b16 %v489, %v488
    %v571 = vpack.c.b16 %v491, %v490
    %v572 = vpack.c.b16 %v493, %v492
    %v573 = vpack.c.b16 %v495, %v494
    %v574 = vpack.c.b16 %v497, %v496
    %v575 = vpack.c.b16 %v499, %v498
    %v576 = vpack.c.b16 %v501, %v500
    %v577 = vpack.c.b16 %v503, %v502
    %v578 = vpack.c.b16 %v505, %v504
    %v579 = vpack.c.b16 %v507, %v506
    %v580 = vpack.c.b16 %v509, %v508
    %v581 = vpack.c.b16 %v511, %v510
    %v582 = vpack.c.b16 %v513, %v512
    %v583 = vpack.c.b16 %v515, %v514
    %v584 = vpack.c.b16 %v517, %v516
    %v585 = vpack.c.b16 %v519, %v518
    %v586 = vpack.c.b16 %v521, %v520
    %v587 = vpack.c.b16 %v523, %v522
    %652 = vmatprep.subr.bf16.mxu0 0
    %653 = vmatpush1.bf16.msra.mxu0 %v524
    %654 = vmatprep.subr.bf16.mxu0 0
    %655 = vmatpush1.bf16.msra.mxu0 %v525
    %656 = vmatprep.subr.bf16.mxu0 0
    %657 = vmatpush1.bf16.msra.mxu0 %v526
    %658 = vmatprep.subr.bf16.mxu0 0
    %659 = vmatpush1.bf16.msra.mxu0 %v527
    %660 = vmatprep.subr.bf16.mxu0 0
    %661 = vmatpush1.bf16.msra.mxu0 %v528
    %662 = vmatprep.subr.bf16.mxu0 0
    %663 = vmatpush1.bf16.msra.mxu0 %v529
    %664 = vmatprep.subr.bf16.mxu0 0
    %665 = vmatpush1.bf16.msra.mxu0 %v530
    %666 = vmatprep.subr.bf16.mxu0 0
    %667 = vmatpush1.bf16.msra.mxu0 %v531
    %668 = vmatprep.subr.bf16.mxu0 0
    %669 = vmatpush1.bf16.msra.mxu0 %v532
    %670 = vmatprep.subr.bf16.mxu0 0
    %671 = vmatpush1.bf16.msra.mxu0 %v533
    %672 = vmatprep.subr.bf16.mxu0 0
    %673 = vmatpush1.bf16.msra.mxu0 %v534
    %674 = vmatprep.subr.bf16.mxu0 0
    %675 = vmatpush1.bf16.msra.mxu0 %v535
    %676 = vmatprep.subr.bf16.mxu0 0
    %677 = vmatpush1.bf16.msra.mxu0 %v536
    %678 = vmatprep.subr.bf16.mxu0 0
    %679 = vmatpush1.bf16.msra.mxu0 %v537
    %680 = vmatprep.subr.bf16.mxu0 0
    %681 = vmatpush1.bf16.msra.mxu0 %v538
    %682 = vmatprep.subr.bf16.mxu0 0
    %683 = vmatpush1.bf16.msra.mxu0 %v539
    %684 = vmatprep.mubr.bf16.mxu0 %v118
    %685 = vmatmul.mubr.bf16.gmra.mrb[0].mxu0 %v117
    %v686 = vpop.f32.mrb[0].mxu0
    %v687 = vadd.f32 %v266, %v686
    %v688 = vpop.f32.mrb[0].mxu0
    %v689 = vpop.f32.mrb[0].mxu0
    %v690 = vadd.f32 %v266, %v689
    %v691 = vpop.f32.mrb[0].mxu0
    %692 = vmatprep.mubr.bf16.mxu0 %v126
    %693 = vmatmul.mubr.bf16.gmra.mrb[0].mxu0 %v125
    %v694 = vpop.f32.mrb[0].mxu0
    %v695 = vadd.f32 %v266, %v694
    %v696 = vpop.f32.mrb[0].mxu0
    %v697 = vpop.f32.mrb[0].mxu0
    %v698 = vpop.f32.mrb[0].mxu0
    %699 = vdwg.mxu0
    %700 = vmatprep.subr.bf16.mxu0 0
    %701 = vmatpush1.bf16.msra.mxu0 %v540
    %702 = vmatprep.subr.bf16.mxu0 0
    %703 = vmatpush1.bf16.msra.mxu0 %v541
    %704 = vmatprep.subr.bf16.mxu0 0
    %705 = vmatpush1.bf16.msra.mxu0 %v542
    %706 = vmatprep.subr.bf16.mxu0 0
    %707 = vmatpush1.bf16.msra.mxu0 %v543
    %708 = vmatprep.subr.bf16.mxu0 0
    %709 = vmatpush1.bf16.msra.mxu0 %v544
    %710 = vmatprep.subr.bf16.mxu0 0
    %711 = vmatpush1.bf16.msra.mxu0 %v545
    %712 = vmatprep.subr.bf16.mxu0 0
    %713 = vmatpush1.bf16.msra.mxu0 %v546
    %714 = vmatprep.subr.bf16.mxu0 0
    %715 = vmatpush1.bf16.msra.mxu0 %v547
    %716 = vmatprep.subr.bf16.mxu0 0
    %717 = vmatpush1.bf16.msra.mxu0 %v548
    %718 = vmatprep.subr.bf16.mxu0 0
    %719 = vmatpush1.bf16.msra.mxu0 %v549
    %720 = vmatprep.subr.bf16.mxu0 0
    %721 = vmatpush1.bf16.msra.mxu0 %v550
    %722 = vmatprep.subr.bf16.mxu0 0
    %723 = vmatpush1.bf16.msra.mxu0 %v551
    %724 = vmatprep.subr.bf16.mxu0 0
    %725 = vmatpush1.bf16.msra.mxu0 %v552
    %726 = vmatprep.subr.bf16.mxu0 0
    %727 = vmatpush1.bf16.msra.mxu0 %v553
    %728 = vmatprep.subr.bf16.mxu0 0
    %729 = vmatpush1.bf16.msra.mxu0 %v554
    %730 = vmatprep.subr.bf16.mxu0 0
    %731 = vmatpush1.bf16.msra.mxu0 %v555
    %732 = vmatprep.mubr.bf16.mxu0 %v120
    %733 = vmatmul.mubr.bf16.gmra.mrb[0].mxu0 %v119
    %v734 = vpop.f32.mrb[0].mxu0
    %v735 = vadd.f32 %v687, %v734
    %v736 = vpop.f32.mrb[0].mxu0
    %v737 = vpop.f32.mrb[0].mxu0
    %v738 = vadd.f32 %v690, %v737
    %v739 = vpop.f32.mrb[0].mxu0
    %740 = vmatprep.mubr.bf16.mxu0 %v128
    %741 = vmatmul.mubr.bf16.gmra.mrb[0].mxu0 %v127
    %v742 = vpop.f32.mrb[0].mxu0
    %v743 = vadd.f32 %v695, %v742
    %v744 = vpop.f32.mrb[0].mxu0
    %v745 = vpop.f32.mrb[0].mxu0
    %v746 = vpop.f32.mrb[0].mxu0
    %747 = vdwg.mxu0
    %748 = vmatprep.subr.bf16.mxu0 0
    %749 = vmatpush1.bf16.msra.mxu0 %v556
    %750 = vmatprep.subr.bf16.mxu0 0
    %751 = vmatpush1.bf16.msra.mxu0 %v557
    %752 = vmatprep.subr.bf16.mxu0 0
    %753 = vmatpush1.bf16.msra.mxu0 %v558
    %754 = vmatprep.subr.bf16.mxu0 0
    %755 = vmatpush1.bf16.msra.mxu0 %v559
    %756 = vmatprep.subr.bf16.mxu0 0
    %757 = vmatpush1.bf16.msra.mxu0 %v560
    %758 = vmatprep.subr.bf16.mxu0 0
    %759 = vmatpush1.bf16.msra.mxu0 %v561
    %760 = vmatprep.subr.bf16.mxu0 0
    %761 = vmatpush1.bf16.msra.mxu0 %v562
    %762 = vmatprep.subr.bf16.mxu0 0
    %763 = vmatpush1.bf16.msra.mxu0 %v563
    %764 = vmatprep.subr.bf16.mxu0 0
    %765 = vmatpush1.bf16.msra.mxu0 %v564
    %766 = vmatprep.subr.bf16.mxu0 0
    %767 = vmatpush1.bf16.msra.mxu0 %v565
    %768 = vmatprep.subr.bf16.mxu0 0
    %769 = vmatpush1.bf16.msra.mxu0 %v566
    %770 = vmatprep.subr.bf16.mxu0 0
    %771 = vmatpush1.bf16.msra.mxu0 %v567
    %772 = vmatprep.subr.bf16.mxu0 0
    %773 = vmatpush1.bf16.msra.mxu0 %v568
    %774 = vmatprep.subr.bf16.mxu0 0
    %775 = vmatpush1.bf16.msra.mxu0 %v569
    %776 = vmatprep.subr.bf16.mxu0 0
    %777 = vmatpush1.bf16.msra.mxu0 %v570
    %778 = vmatprep.subr.bf16.mxu0 0
    %779 = vmatpush1.bf16.msra.mxu0 %v571
    %780 = vmatprep.mubr.bf16.mxu0 %v122
    %781 = vmatmul.mubr.bf16.gmra.mrb[0].mxu0 %v121
    %v782 = vpop.f32.mrb[0].mxu0
    %v783 = vadd.f32 %v735, %v782
    %v784 = vpop.f32.mrb[0].mxu0
    %v785 = vpop.f32.mrb[0].mxu0
    %v786 = vadd.f32 %v738, %v785
    %v787 = vpop.f32.mrb[0].mxu0
    %788 = vmatprep.mubr.bf16.mxu0 %v130
    %789 = vmatmul.mubr.bf16.gmra.mrb[0].mxu0 %v129
    %v790 = vpop.f32.mrb[0].mxu0
    %v791 = vadd.f32 %v743, %v790
    %v792 = vpop.f32.mrb[0].mxu0
    %v793 = vpop.f32.mrb[0].mxu0
    %v794 = vpop.f32.mrb[0].mxu0
    %795 = vdwg.mxu0
    %796 = vmatprep.subr.bf16.mxu0 0
    %797 = vmatpush1.bf16.msra.mxu0 %v572
    %798 = vmatprep.subr.bf16.mxu0 0
    %799 = vmatpush1.bf16.msra.mxu0 %v573
    %800 = vmatprep.subr.bf16.mxu0 0
    %801 = vmatpush1.bf16.msra.mxu0 %v574
    %802 = vmatprep.subr.bf16.mxu0 0
    %803 = vmatpush1.bf16.msra.mxu0 %v575
    %804 = vmatprep.subr.bf16.mxu0 0
    %805 = vmatpush1.bf16.msra.mxu0 %v576
    %806 = vmatprep.subr.bf16.mxu0 0
    %807 = vmatpush1.bf16.msra.mxu0 %v577
    %808 = vmatprep.subr.bf16.mxu0 0
    %809 = vmatpush1.bf16.msra.mxu0 %v578
    %810 = vmatprep.subr.bf16.mxu0 0
    %811 = vmatpush1.bf16.msra.mxu0 %v579
    %812 = vmatprep.subr.bf16.mxu0 0
    %813 = vmatpush1.bf16.msra.mxu0 %v580
    %814 = vmatprep.subr.bf16.mxu0 0
    %815 = vmatpush1.bf16.msra.mxu0 %v581
    %816 = vmatprep.subr.bf16.mxu0 0
    %817 = vmatpush1.bf16.msra.mxu0 %v582
    %818 = vmatprep.subr.bf16.mxu0 0
    %819 = vmatpush1.bf16.msra.mxu0 %v583
    %820 = vmatprep.subr.bf16.mxu0 0
    %821 = vmatpush1.bf16.msra.mxu0 %v584
    %822 = vmatprep.subr.bf16.mxu0 0
    %823 = vmatpush1.bf16.msra.mxu0 %v585
    %824 = vmatprep.subr.bf16.mxu0 0
    %825 = vmatpush1.bf16.msra.mxu0 %v586
    %826 = vmatprep.subr.bf16.mxu0 0
    %827 = vmatpush1.bf16.msra.mxu0 %v587
    %828 = vmatprep.mubr.bf16.mxu0 %v124
    %829 = vmatmul.mubr.bf16.gmra.mrb[0].mxu0 %v123
    %v830 = vpop.f32.mrb[0].mxu0
    %v831 = vadd.f32 %v783, %v830
    %v832 = vpop.f32.mrb[0].mxu0
    %v833 = vpop.f32.mrb[0].mxu0
    %v834 = vadd.f32 %v786, %v833
    %v835 = vpop.f32.mrb[0].mxu0
    %836 = vmatprep.mubr.bf16.mxu0 %v132
    %837 = vmatmul.mubr.bf16.gmra.mrb[0].mxu0 %v131
    %v838 = vpop.f32.mrb[0].mxu0
    %v839 = vadd.f32 %v791, %v838
    %v840 = vpop.f32.mrb[0].mxu0
    %v841 = vpop.f32.mrb[0].mxu0
    %v842 = vpop.f32.mrb[0].mxu0
    %843 = vdwg.mxu0
    %v844 = vmax.f32 %v831, 0.0
    %v845 = vmax.f32 %v834, 0.0
    %v846 = vmax.f32 %v839, 0.0
    %v847 = vpack.c.bf16 %v845, %v844
    %v848 = vpack.c.bf16 %v846, %v846
    %v849 = vld [vmem:[#allocation10] sm:$0xf]
    %v850 = vld [vmem:[#allocation10 + $0x4] sm:$0xf]
    %v851 = vld [vmem:[#allocation10 + $0x8] sm:$0xf]
    %v852 = vld [vmem:[#allocation10 + $0xc] sm:$0xf]
    %v853 = vld [vmem:[#allocation10 + $0x10] sm:$0xf]
    %v854 = vld [vmem:[#allocation10 + $0x14] sm:$0xf]
    %v855 = vld [vmem:[#allocation10 + $0x18] sm:$0xf]
    %v856 = vld [vmem:[#allocation10 + $0x1c] sm:$0xf]
    %v857 = vld [vmem:[#allocation10 + $0x20] sm:$0xf]
    %v858 = vld [vmem:[#allocation10 + $0x24] sm:$0xf]
    %v859 = vld [vmem:[#allocation10 + $0x28] sm:$0xf]
    %v860 = vld [vmem:[#allocation10 + $0x2c] sm:$0xf]
    %v861 = vld [vmem:[#allocation10 + $0x30] sm:$0xf]
    %v862 = vld [vmem:[#allocation10 + $0x34] sm:$0xf]
    %v863 = vld [vmem:[#allocation10 + $0x38] sm:$0xf]
    %v864 = vld [vmem:[#allocation10 + $0x3c] sm:$0xf]
    %v865 = vld [vmem:[%s6] sm:$0x1]
    %v867 = vlaneseq
    %v868 = vshrl.u32 %v867, 7
    %v869 = vsub.s32 0, %v868
    %v870 = vrot.slane %v865, %v869
    %v888 = vunpack.c.l.b16 %v849
    %v889 = vunpack.c.l.b16 %v850
    %v890 = vunpack.c.l.b16 %v851
    %v891 = vunpack.c.l.b16 %v852
    %v892 = vunpack.c.l.b16 %v853
    %v893 = vunpack.c.l.b16 %v854
    %v894 = vunpack.c.l.b16 %v855
    %v895 = vunpack.c.l.b16 %v856
    %v896 = vunpack.c.l.b16 %v857
    %v897 = vunpack.c.l.b16 %v858
    %v898 = vunpack.c.l.b16 %v859
    %v899 = vunpack.c.l.b16 %v860
    %v900 = vunpack.c.l.b16 %v861
    %v901 = vunpack.c.l.b16 %v862
    %v902 = vunpack.c.l.b16 %v863
    %v903 = vunpack.c.l.b16 %v864
    %v904 = vpack.c.b16 %v889, %v888
    %v905 = vpack.c.b16 %v891, %v890
    %v906 = vpack.c.b16 %v893, %v892
    %v907 = vpack.c.b16 %v895, %v894
    %v908 = vpack.c.b16 %v897, %v896
    %v909 = vpack.c.b16 %v899, %v898
    %v910 = vpack.c.b16 %v901, %v900
    %v911 = vpack.c.b16 %v903, %v902
    %920 = vmatprep.subr.bf16.mxu0 0
    %921 = vmatpush1.bf16.msra.mxu0 %v904
    %922 = vmatprep.subr.bf16.mxu0 0
    %923 = vmatpush1.bf16.msra.mxu0 %v905
    %924 = vmatprep.subr.bf16.mxu0 0
    %925 = vmatpush1.bf16.msra.mxu0 %v906
    %926 = vmatprep.subr.bf16.mxu0 0
    %927 = vmatpush1.bf16.msra.mxu0 %v907
    %928 = vmatprep.subr.bf16.mxu0 0
    %929 = vmatpush1.bf16.msra.mxu0 %v908
    %930 = vmatprep.subr.bf16.mxu0 0
    %931 = vmatpush1.bf16.msra.mxu0 %v909
    %932 = vmatprep.subr.bf16.mxu0 0
    %933 = vmatpush1.bf16.msra.mxu0 %v910
    %934 = vmatprep.subr.bf16.mxu0 0
    %935 = vmatpush1.bf16.msra.mxu0 %v911
    %936 = vmatprep.subr.bf16.mxu0 0
    %937 = vmatpush1.bf16.msra.mxu0 0
    %938 = vmatprep.subr.bf16.mxu0 0
    %939 = vmatpush1.bf16.msra.mxu0 0
    %940 = vmatprep.subr.bf16.mxu0 0
    %941 = vmatpush1.bf16.msra.mxu0 0
    %942 = vmatprep.subr.bf16.mxu0 0
    %943 = vmatpush1.bf16.msra.mxu0 0
    %944 = vmatprep.subr.bf16.mxu0 0
    %945 = vmatpush1.bf16.msra.mxu0 0
    %946 = vmatprep.subr.bf16.mxu0 0
    %947 = vmatpush1.bf16.msra.mxu0 0
    %948 = vmatprep.subr.bf16.mxu0 0
    %949 = vmatpush1.bf16.msra.mxu0 0
    %950 = vmatprep.subr.bf16.mxu0 0
    %951 = vmatpush1.bf16.msra.mxu0 0
    %952 = vmatprep.mubr.bf16.mxu0 0
    %953 = vmatmul.mubr.bf16.gmra.mrb[0].mxu0 %v847
    %v954 = vpop.f32.mrb[0].mxu0
    %v955 = vadd.f32 %v870, %v954
    %v956 = vpop.f32.mrb[0].mxu0
    %v957 = vpop.f32.mrb[0].mxu0
    %v958 = vadd.f32 %v870, %v957
    %v959 = vpop.f32.mrb[0].mxu0
    %960 = vmatprep.mubr.bf16.mxu0 0
    %961 = vmatmul.mubr.bf16.gmra.mrb[0].mxu0 %v848
    %v962 = vpop.f32.mrb[0].mxu0
    %v963 = vadd.f32 %v870, %v962
    %v964 = vpop.f32.mrb[0].mxu0
    %v965 = vpop.f32.mrb[0].mxu0
    %v966 = vpop.f32.mrb[0].mxu0
    %967 = vdwg.mxu0
    %968 = vst [vmem:[#allocation11] sm:$0xff] %v955
    %969 = vst [vmem:[#allocation11 + $0x8] sm:$0xff] %v958
    %970 = vst [vmem:[#allocation11 + $0x10] sm:$0xff] %v963
    %v971 = vsub.f32 %v955, %v958
    %v972 = vadd.f32 %v971, 1e-06
    %v973 = vsub.f32 %v955, %v963
    %v974 = vadd.f32 %v973, 1e-06
    %v975 = vmul.f32 %v972, %v972
    %976 = vadd.xlane.f32.xlu0 %v975
    %v977 = vpop.xlane.xlu0 %976
    %v978 = vrsqrt.pop %v977
    %v979 = vmul.f32 %v977, %v978
    %vm980 = vcmp.eq.f32.partialorder %v977, inf
    %v981 = vsel %vm980, %v977, %v979
    %vm982 = vcmp.eq.f32.partialorder %v977, 0.0
    %v983 = vand.u32 %v977, 2147483648
    %v984 = vsel %vm982, %v983, %v981
    %v985 = vmul.f32 %v974, %v974
    %986 = vadd.xlane.f32.xlu0 %v985
    %v987 = vpop.xlane.xlu0 %986
    %v988 = vrsqrt.pop %v987
    %v989 = vmul.f32 %v987, %v988
    %vm990 = vcmp.eq.f32.partialorder %v987, inf
    %v991 = vsel %vm990, %v987, %v989
    %vm992 = vcmp.eq.f32.partialorder %v987, 0.0
    %v993 = vand.u32 %v987, 2147483648
    %v994 = vsel %vm992, %v993, %v991
    %v995 = vlaneseq
    %v996 = vand.u32 %v995, 127
    %vm997 = vcmp.lt.s32.totalorder %v996, 64
    %v998 = vsel %vm997, %v984, %v994
    %999 = vst [vmem:[#allocation12] sm:$0xff] %v998
    // Predicated region
    $region50: #{tpu_custom_call.1} parent=1 // pred_check
      _
    $region51: #{tpu_custom_call.1} parent=1 // pred_check_branch
      %1001 = sbr.rel (0) target = $region53
    $region52: #{tpu_custom_call.1} parent=1 // pred_region
      %s1003 = ssub.s32 384, 384
      %1004 = vsyncadd [#allocation4], %s1003
      %s1005 = sshll.u32 [#allocation11], 4
      %s1006 = int_to_ptr.vmem [resolvable:$true] %s1005
      %1011 = dma.vmem_to_hbm [thread:$0]  %s1006, 384, %s7, [#allocation4], 128, 128, 8
    $region53: #{tpu_custom_call.1} parent=1 // pred_fallthru
      _
    // Predicated region
    $region54: #{tpu_custom_call.1} parent=1 // pred_check
      _
    $region55: #{tpu_custom_call.1} parent=1 // pred_check_branch
      %1013 = sbr.rel (0) target = $region57
    $region56: #{tpu_custom_call.1} parent=1 // pred_region
      %s1015 = ssub.s32 128, 128
      %1016 = vsyncadd [#allocation13], %s1015
      %s1018 = sshll.u32 [#allocation12], 4
      %s1019 = int_to_ptr.vmem [resolvable:$true] %s1018
      %1021 = dma.vmem_to_hbm [thread:$0]  %s1019, 128, %s8, [#allocation13]
    $region57: #{tpu_custom_call.1} parent=1 // pred_fallthru
      _
    // Predicated region
    $region58: #{tpu_custom_call.1} parent=1 // pred_check
      _
    $region59: #{tpu_custom_call.1} parent=1 // pred_check_branch
      %1023 = sbr.rel (0) target = $region61
    $region60: #{tpu_custom_call.1} parent=1 // pred_region
      %1024 = dma.done [#allocation4], 384
    $region61: #{tpu_custom_call.1} parent=1 // pred_fallthru
      _
    // Predicated region
    $region62: #{tpu_custom_call.1} parent=1 // pred_check
      _
    $region63: #{tpu_custom_call.1} parent=1 // pred_check_branch
      %1026 = sbr.rel (0) target = $region65
    $region64: #{tpu_custom_call.1} parent=1 // pred_region
      %1027 = dma.done [#allocation13], 128
    $region65: #{tpu_custom_call.1} parent=1 // pred_fallthru
      _
    %1028 = vsyncpa [#allocation3], 1
    %1029 = vsyncpa [#allocation6], 1
    %1030 = vsyncpa [#allocation9], 1
    %1031 = vsyncpa [#allocation4], 1
    %1032 = vsyncpa [#allocation13], 1

</llo_original>
